<compile_context>
chip_gen: v6e
topology: v6e:2x2x1
jax: 0.10.0
libtpu: 0.0.40
codegen_flags: <defaults>
</compile_context>

<pallas_src>
import functools

import jax
import jax.numpy as jnp
from jax.experimental import pallas as pl
from jax.experimental.pallas import tpu as pltpu


def _round_up(n, m):
    return ((n + m - 1) // m) * m


def _cdiv(a, b):
    return -(-a // b)


def _actor_critic_kernel(x_ref,
                         w1_ref, b1_ref,
                         w2_ref, b2_ref,
                         wh_ref, bh_ref,
                         head_ref, priors_ref,
                         *, num_outputs):
    # x tile: [TILE_B, OBS_P] bf16. Weights resident in VMEM across the batch grid.
    x = x_ref[...]

    # shared layers: Linear -> ReLU -> Linear -> ReLU (bf16 matmul, fp32 accumulate)
    h = jnp.dot(x, w1_ref[...], preferred_element_type=jnp.float32) + b1_ref[...]
    h = jnp.maximum(h, 0.0).astype(jnp.bfloat16)
    h = jnp.dot(h, w2_ref[...], preferred_element_type=jnp.float32) + b2_ref[...]
    h = jnp.maximum(h, 0.0).astype(jnp.bfloat16)

    # fused actor+critic head: cols [0, A) = policy logits, col A = value, rest padding.
    head = jnp.dot(h, wh_ref[...], preferred_element_type=jnp.float32) + bh_ref[...]
    head_ref[...] = head

    # fused softmax over the real logit lanes only (EUP exp + exact reciprocal).
    lane = jax.lax.broadcasted_iota(jnp.int32, head.shape, dimension=1)
    is_logit = lane < num_outputs
    masked = jnp.where(is_logit, head, -jnp.inf)
    m = jnp.max(masked, axis=-1, keepdims=True)
    e = jnp.where(is_logit, jnp.exp(masked - m), 0.0)
    denom = jnp.sum(e, axis=-1, keepdims=True)
    priors_ref[...] = (e * pl.reciprocal(denom)).astype(priors_ref.dtype)


def _choose_tiling(batch, tile_b_max):
    """Pick (tile_b, num_tiles). Prefer >=2 (even) tiles for large batches (v7x: 2 TCs)."""
    b = max(int(batch), 1)
    num_tiles = _cdiv(b, tile_b_max)
    if num_tiles == 1:
        if b < 64:
            return _round_up(b, 16), 1        # tiny batch: one tile, no extra overhead
        num_tiles = 2                          # give both v7x TensorCores a tile
    elif num_tiles % 2 == 1:
        num_tiles += 1                         # even tile count balances across 2 TCs
    tile_b = _round_up(_cdiv(b, num_tiles), 16)
    return tile_b, _cdiv(b, tile_b)


def _vmem_limit_bytes(tile_b, obs_p, h_p, head_p):
    """Footprint of double-buffered activation/output tiles + resident weights, 2x headroom."""
    weight_bytes = 2 * ((obs_p * h_p + h_p * h_p + h_p * head_p) * 2
                        + (2 * h_p + head_p) * 4)
    in_bytes = 2 * tile_b * obs_p * 2                       # x tile, bf16, double-buffered
    out_bytes = 2 * tile_b * head_p * 4 + 2 * tile_b * head_p * 2   # head f32 + priors bf16
    interm_bytes = 6 * tile_b * h_p * 4                     # hidden activations / epilogue
    total = weight_bytes + in_bytes + out_bytes + interm_bytes
    return int(min(max(2 * total, 8 << 20), 32 << 20))


def actor_critic_forward(x, padded_params, num_outputs, *, tile_b_max=2048):
    """Fused ActorCritic forward. Returns (logits [B, A], value [B, 1], priors [B, A])."""
    B = int(x.shape[0])
    w1 = padded_params["w1"]
    obs_p, h_p = w1.shape
    head_p = padded_params["wh"].shape[1]

    tile_b, num_tiles = _choose_tiling(B, tile_b_max)

    # Pad only the lane (feature) dim; the ragged batch edge is handled by the cdiv grid
    # (out-of-bounds rows are garbage in VMEM but row-wise math keeps them isolated and
    # Pallas masks their writeback).
    x_p = jnp.pad(x.astype(jnp.bfloat16), ((0, 0), (0, obs_p - x.shape[1])))

    vmem_limit = _vmem_limit_bytes(tile_b, obs_p, h_p, head_p)

    pinned = lambda i: (0, 0)      # weights/biases: same block every grid step (resident)
    batched = lambda i: (i, 0)     # activations/outputs: tiled over batch

    # Note: for large hidden sizes (>=1024) set pipeline_mode=pl.Buffered(1) on the
    # pinned weight specs to avoid double-buffering revisited blocks; at h_p=128 the
    # weights are ~100 KiB so it is irrelevant.
    head, priors = pl.pallas_call(
        functools.partial(_actor_critic_kernel, num_outputs=num_outputs),
        out_shape=(
            jax.ShapeDtypeStruct((B, head_p), jnp.float32),    # logits || value (f32)
            jax.ShapeDtypeStruct((B, head_p), jnp.bfloat16),   # softmax priors (bf16)
        ),
        grid=(num_tiles,),
        in_specs=[
            pl.BlockSpec((tile_b, obs_p), batched),
            pl.BlockSpec((obs_p, h_p), pinned),
            pl.BlockSpec((1, h_p), pinned),
            pl.BlockSpec((h_p, h_p), pinned),
            pl.BlockSpec((1, h_p), pinned),
            pl.BlockSpec((h_p, head_p), pinned),
            pl.BlockSpec((1, head_p), pinned),
        ],
        out_specs=(
            pl.BlockSpec((tile_b, head_p), batched),
            pl.BlockSpec((tile_b, head_p), batched),
        ),
        compiler_params=pltpu.CompilerParams(
            dimension_semantics=("parallel",),   # v7x: shard batch tiles over both TCs
            vmem_limit_bytes=vmem_limit,
        ),
    )(
        x_p,
        padded_params["w1"], padded_params["b1"],
        padded_params["w2"], padded_params["b2"],
        padded_params["wh"], padded_params["bh"],
    )

    logits = head[:, :num_outputs]
    value = head[:, num_outputs:num_outputs + 1]
    # bf16 writeback halves prior traffic; renormalize in f32 so they sum to exactly 1.
    priors = priors[:, :num_outputs].astype(jnp.float32)
    priors = priors / jnp.sum(priors, axis=-1, keepdims=True)
    return logits, value, priors


# ---------------------------------------------------------------------------
# Parameter construction (torch.nn.Linear-style init) + TPU padding / head fusion.
# ---------------------------------------------------------------------------

def _torch_linear_init(key, fan_in, fan_out):
    """torch.nn.Linear default init (uniform +/- 1/sqrt(fan_in)).
    Weight already transposed to [fan_in, fan_out]; bias as [1, fan_out]."""
    kw, kb = jax.random.split(key)
    bound = 1.0 / jnp.sqrt(jnp.float32(fan_in))
    w = jax.random.uniform(kw, (fan_in, fan_out), jnp.float32, -bound, bound)
    b = jax.random.uniform(kb, (1, fan_out), jnp.float32, -bound, bound)
    return w, b


def make_params(key, obs_dim, hidden, num_outputs):
    k1, k2, k3, k4 = jax.random.split(key, 4)
    w1, b1 = _torch_linear_init(k1, obs_dim, hidden)
    w2, b2 = _torch_linear_init(k2, hidden, hidden)
    wa, ba = _torch_linear_init(k3, hidden, num_outputs)
    wc, bc = _torch_linear_init(k4, hidden, 1)
    return dict(w1=w1, b1=b1, w2=w2, b2=b2, wa=wa, ba=ba, wc=wc, bc=bc)


def prepare_params(params, obs_dim, hidden, num_outputs):
    """Zero-pad feature dims to 128 lanes, fuse actor+critic heads, cast weights to bf16."""
    obs_p = _round_up(obs_dim, 128)
    h_p = _round_up(hidden, 128)
    head_p = _round_up(num_outputs + 1, 128)

    def pad2(a, r, c):
        out = jnp.zeros((r, c), a.dtype)
        return out.at[:a.shape[0], :a.shape[1]].set(a)

    w1 = pad2(params["w1"], obs_p, h_p).astype(jnp.bfloat16)
    b1 = pad2(params["b1"], 1, h_p)
    w2 = pad2(params["w2"], h_p, h_p).astype(jnp.bfloat16)
    b2 = pad2(params["b2"], 1, h_p)

    # fused head: [H, A] actor || [H, 1] critic, zero-padded out to 128 lanes.
    wh = jnp.concatenate([params["wa"], params["wc"]], axis=1)
    bh = jnp.concatenate([params["ba"], params["bc"]], axis=1)
    wh = pad2(wh, h_p, head_p).astype(jnp.bfloat16)
    bh = pad2(bh, 1, head_p)

    return dict(w1=w1, b1=b1, w2=w2, b2=b2, wh=wh, bh=bh)


def _reference_forward(x, padded_params, obs_dim, hidden, num_outputs):
    """Plain-JAX reference using the same (padded, bf16) weights as the kernel."""
    obs_p = padded_params["w1"].shape[0]
    x_p = jnp.zeros((x.shape[0], obs_p), jnp.float32).at[:, :obs_dim].set(x)
    w1 = padded_params["w1"].astype(jnp.float32)
    w2 = padded_params["w2"].astype(jnp.float32)
    wh = padded_params["wh"].astype(jnp.float32)
    h = jnp.maximum(x_p @ w1 + padded_params["b1"], 0.0)
    h = jnp.maximum(h @ w2 + padded_params["b2"], 0.0)
    head = h @ wh + padded_params["bh"]
    logits = head[:, :num_outputs]
    value = head[:, num_outputs:num_outputs + 1]
    priors = jax.nn.softmax(logits, axis=-1)
    return logits, value, priors


if __name__ == "__main__":
    # Small shapes consistent with the module: batch=2, obs_dim=16, hidden=32, actions=8.
    B, OBS_DIM, HIDDEN, NUM_OUTPUTS = 2, 16, 32, 8

    key = jax.random.PRNGKey(0)
    k_obs, k_params = jax.random.split(key)

    x = jax.random.normal(k_obs, (B, OBS_DIM), jnp.float32)
    params = make_params(k_params, OBS_DIM, HIDDEN, NUM_OUTPUTS)
    padded = prepare_params(params, OBS_DIM, HIDDEN, NUM_OUTPUTS)

    logits, value, priors = actor_critic_forward(x, padded, NUM_OUTPUTS)
    jax.block_until_ready((logits, value, priors))

    # Cross-check against a plain-JAX reference of the same forward pass.
    ref_logits, ref_value, ref_priors = _reference_forward(
        x, padded, OBS_DIM, HIDDEN, NUM_OUTPUTS)
    assert logits.shape == (B, NUM_OUTPUTS) and value.shape == (B, 1)
    assert priors.shape == (B, NUM_OUTPUTS)
    # bf16 matmuls / bf16 prior writeback -> slightly loose tolerance.
    assert jnp.allclose(logits, ref_logits, atol=2e-2, rtol=2e-2)
    assert jnp.allclose(value, ref_value, atol=2e-2, rtol=2e-2)
    assert jnp.allclose(priors, ref_priors, atol=2e-2, rtol=2e-2)
    assert jnp.allclose(jnp.sum(priors, axis=-1), 1.0, atol=1e-5)

    print("KERNEL_OK")
</pallas_src>

<mosaic_0001>
module attributes {stable_mosaic.version = 11 : i64} {
  func.func @_actor_critic_kernel(%arg0: i32, %arg1: memref<16x128xbf16, #tpu.memory_space<vmem>>, %arg2: memref<128x128xbf16, #tpu.memory_space<vmem>>, %arg3: memref<1x128xf32, #tpu.memory_space<vmem>>, %arg4: memref<128x128xbf16, #tpu.memory_space<vmem>>, %arg5: memref<1x128xf32, #tpu.memory_space<vmem>>, %arg6: memref<128x128xbf16, #tpu.memory_space<vmem>>, %arg7: memref<1x128xf32, #tpu.memory_space<vmem>>, %arg8: memref<16x128xf32, #tpu.memory_space<vmem>>, %arg9: memref<16x128xbf16, #tpu.memory_space<vmem>>) attributes {dimension_semantics = [#tpu.dimension_semantics<parallel>], iteration_bounds = array<i64: 1>, scalar_prefetch = 0 : i64, scratch_operands = 0 : i64, tpu.core_type = #tpu.core_type<tc>, window_params = [{transform_indices = @transform_0, window_bounds = array<i64: 16, 128>}, {pipeline_mode = #tpu.pipeline_mode<synchronous>, transform_indices = @transform_1, window_bounds = array<i64: 128, 128>}, {pipeline_mode = #tpu.pipeline_mode<synchronous>, transform_indices = @transform_2, window_bounds = array<i64: 1, 128>}, {pipeline_mode = #tpu.pipeline_mode<synchronous>, transform_indices = @transform_3, window_bounds = array<i64: 128, 128>}, {pipeline_mode = #tpu.pipeline_mode<synchronous>, transform_indices = @transform_4, window_bounds = array<i64: 1, 128>}, {pipeline_mode = #tpu.pipeline_mode<synchronous>, transform_indices = @transform_5, window_bounds = array<i64: 128, 128>}, {pipeline_mode = #tpu.pipeline_mode<synchronous>, transform_indices = @transform_6, window_bounds = array<i64: 1, 128>}, {transform_indices = @transform_7, window_bounds = array<i64: 16, 128>}, {transform_indices = @transform_8, window_bounds = array<i64: 16, 128>}]} {
    %c0 = arith.constant 0 : index
    %c0_0 = arith.constant 0 : index
    %0 = vector.load %arg1[%c0, %c0_0] : memref<16x128xbf16, #tpu.memory_space<vmem>>, vector<16x128xbf16>
    %c0_1 = arith.constant 0 : index
    %c0_2 = arith.constant 0 : index
    %1 = vector.load %arg2[%c0_1, %c0_2] : memref<128x128xbf16, #tpu.memory_space<vmem>>, vector<128x128xbf16>
    %cst = arith.constant dense<0.000000e+00> : vector<16x128xf32>
    %2 = tpu.matmul %0, %1, %cst {dimension_numbers = #tpu.dot_dimension_numbers<[1], [0], [0], [1], [0, 0, 1, 1], [], []>} : vector<16x128xbf16>, vector<128x128xbf16>, vector<16x128xf32> -> vector<16x128xf32>
    %c0_3 = arith.constant 0 : index
    %c0_4 = arith.constant 0 : index
    %3 = vector.load %arg3[%c0_3, %c0_4] : memref<1x128xf32, #tpu.memory_space<vmem>>, vector<1x128xf32>
    %4 = vector.broadcast %3 : vector<1x128xf32> to vector<16x128xf32>
    %5 = arith.addf %2, %4 : vector<16x128xf32>
    %cst_5 = arith.constant 0.000000e+00 : f32
    %6 = vector.broadcast %cst_5 : f32 to vector<16x128xf32>
    %7 = arith.maximumf %5, %6 : vector<16x128xf32>
    %8 = arith.truncf %7 : vector<16x128xf32> to vector<16x128xbf16>
    %c0_6 = arith.constant 0 : index
    %c0_7 = arith.constant 0 : index
    %9 = vector.load %arg4[%c0_6, %c0_7] : memref<128x128xbf16, #tpu.memory_space<vmem>>, vector<128x128xbf16>
    %cst_8 = arith.constant dense<0.000000e+00> : vector<16x128xf32>
    %10 = tpu.matmul %8, %9, %cst_8 {dimension_numbers = #tpu.dot_dimension_numbers<[1], [0], [0], [1], [0, 0, 1, 1], [], []>} : vector<16x128xbf16>, vector<128x128xbf16>, vector<16x128xf32> -> vector<16x128xf32>
    %c0_9 = arith.constant 0 : index
    %c0_10 = arith.constant 0 : index
    %11 = vector.load %arg5[%c0_9, %c0_10] : memref<1x128xf32, #tpu.memory_space<vmem>>, vector<1x128xf32>
    %12 = vector.broadcast %11 : vector<1x128xf32> to vector<16x128xf32>
    %13 = arith.addf %10, %12 : vector<16x128xf32>
    %cst_11 = arith.constant 0.000000e+00 : f32
    %14 = vector.broadcast %cst_11 : f32 to vector<16x128xf32>
    %15 = arith.maximumf %13, %14 : vector<16x128xf32>
    %16 = arith.truncf %15 : vector<16x128xf32> to vector<16x128xbf16>
    %c0_12 = arith.constant 0 : index
    %c0_13 = arith.constant 0 : index
    %17 = vector.load %arg6[%c0_12, %c0_13] : memref<128x128xbf16, #tpu.memory_space<vmem>>, vector<128x128xbf16>
    %cst_14 = arith.constant dense<0.000000e+00> : vector<16x128xf32>
    %18 = tpu.matmul %16, %17, %cst_14 {dimension_numbers = #tpu.dot_dimension_numbers<[1], [0], [0], [1], [0, 0, 1, 1], [], []>} : vector<16x128xbf16>, vector<128x128xbf16>, vector<16x128xf32> -> vector<16x128xf32>
    %c0_15 = arith.constant 0 : index
    %c0_16 = arith.constant 0 : index
    %19 = vector.load %arg7[%c0_15, %c0_16] : memref<1x128xf32, #tpu.memory_space<vmem>>, vector<1x128xf32>
    %20 = vector.broadcast %19 : vector<1x128xf32> to vector<16x128xf32>
    %21 = arith.addf %18, %20 : vector<16x128xf32>
    %c0_17 = arith.constant 0 : index
    %c0_18 = arith.constant 0 : index
    %22 = vector.load %arg8[%c0_17, %c0_18] : memref<16x128xf32, #tpu.memory_space<vmem>>, vector<16x128xf32>
    tpu.vector_store %arg8[%c0_17, %c0_18], %21 {strides = array<i32>} : memref<16x128xf32, #tpu.memory_space<vmem>>, vector<16x128xf32>,
    %23 = tpu.iota {dimensions = array<i32: 1>} : vector<16x128xi32>
    %c8_i32 = arith.constant 8 : i32
    %24 = vector.broadcast %c8_i32 : i32 to vector<16x128xi32>
    %25 = arith.cmpi slt, %23, %24 : vector<16x128xi32>
    %cst_19 = arith.constant 0xFF800000 : f32
    %26 = vector.broadcast %cst_19 : f32 to vector<16x128xf32>
    %27 = arith.select %25, %21, %26 : vector<16x128xi1>, vector<16x128xf32>
    %cst_20 = arith.constant dense<0xFF800000> : vector<16xf32>
    %28 = vector.multi_reduction <maximumf>, %27, %cst_20 [1] : vector<16x128xf32> to vector<16xf32>
    %29 = vector.shape_cast %28 : vector<16xf32> to vector<16x1xf32>
    %30 = vector.broadcast %29 : vector<16x1xf32> to vector<16x128xf32>
    %31 = arith.subf %27, %30 : vector<16x128xf32>
    %32 = math.exp %31 : vector<16x128xf32>
    %cst_21 = arith.constant 0.000000e+00 : f32
    %33 = vector.broadcast %cst_21 : f32 to vector<16x128xf32>
    %34 = arith.select %25, %32, %33 : vector<16x128xi1>, vector<16x128xf32>
    %cst_22 = arith.constant dense<0.000000e+00> : vector<16xf32>
    %35 = vector.multi_reduction <add>, %34, %cst_22 [1] : vector<16x128xf32> to vector<16xf32>
    %36 = vector.shape_cast %35 : vector<16xf32> to vector<16x1xf32>
    %37 = tpu.reciprocal %36 : vector<16x1xf32> -> vector<16x1xf32>
    %38 = vector.broadcast %37 : vector<16x1xf32> to vector<16x128xf32>
    %39 = arith.mulf %34, %38 : vector<16x128xf32>
    %40 = arith.truncf %39 : vector<16x128xf32> to vector<16x128xbf16>
    %c0_23 = arith.constant 0 : index
    %c0_24 = arith.constant 0 : index
    %41 = vector.load %arg9[%c0_23, %c0_24] : memref<16x128xbf16, #tpu.memory_space<vmem>>, vector<16x128xbf16>
    tpu.vector_store %arg9[%c0_23, %c0_24], %40 {strides = array<i32>} : memref<16x128xbf16, #tpu.memory_space<vmem>>, vector<16x128xbf16>,
    return
  }
  func.func @transform_0(%arg0: i32) -> (i32, i32) {
    %c0_i32 = arith.constant 0 : i32
    %c0_i32_0 = arith.constant 0 : i32
    return %arg0, %c0_i32 : i32, i32
  }
  func.func @transform_1(%arg0: i32) -> (i32, i32) {
    %c0_i32 = arith.constant 0 : i32
    %c0_i32_0 = arith.constant 0 : i32
    %c0_i32_1 = arith.constant 0 : i32
    return %c0_i32, %c0_i32_0 : i32, i32
  }
  func.func @transform_2(%arg0: i32) -> (i32, i32) {
    %c0_i32 = arith.constant 0 : i32
    %c0_i32_0 = arith.constant 0 : i32
    %c0_i32_1 = arith.constant 0 : i32
    return %c0_i32, %c0_i32_0 : i32, i32
  }
  func.func @transform_3(%arg0: i32) -> (i32, i32) {
    %c0_i32 = arith.constant 0 : i32
    %c0_i32_0 = arith.constant 0 : i32
    %c0_i32_1 = arith.constant 0 : i32
    return %c0_i32, %c0_i32_0 : i32, i32
  }
  func.func @transform_4(%arg0: i32) -> (i32, i32) {
    %c0_i32 = arith.constant 0 : i32
    %c0_i32_0 = arith.constant 0 : i32
    %c0_i32_1 = arith.constant 0 : i32
    return %c0_i32, %c0_i32_0 : i32, i32
  }
  func.func @transform_5(%arg0: i32) -> (i32, i32) {
    %c0_i32 = arith.constant 0 : i32
    %c0_i32_0 = arith.constant 0 : i32
    %c0_i32_1 = arith.constant 0 : i32
    return %c0_i32, %c0_i32_0 : i32, i32
  }
  func.func @transform_6(%arg0: i32) -> (i32, i32) {
    %c0_i32 = arith.constant 0 : i32
    %c0_i32_0 = arith.constant 0 : i32
    %c0_i32_1 = arith.constant 0 : i32
    return %c0_i32, %c0_i32_0 : i32, i32
  }
  func.func @transform_7(%arg0: i32) -> (i32, i32) {
    %c0_i32 = arith.constant 0 : i32
    %c0_i32_0 = arith.constant 0 : i32
    return %arg0, %c0_i32 : i32, i32
  }
  func.func @transform_8(%arg0: i32) -> (i32, i32) {
    %c0_i32 = arith.constant 0 : i32
    %c0_i32_0 = arith.constant 0 : i32
    return %arg0, %c0_i32 : i32, i32
  }
}

</mosaic_0001>

<llo_original>
// kernel: tpu_custom_call.1
$region0: #{tpu_custom_call.1}
  #allocation0 [shape = 'u32[]', space=smem, size = 0x4, offset = 0x4, fixed_abs, tag = 'smem constant byte address 0x4 - core index']
  #allocation1 [shape = 'u32[144,128]{1,0:T(1,128)}', space=vmem, size = 0x12000, scoped, tag = 'internal scratch']
  %s0 = inlined_call_operand.hbm [shape: bf16[2,128], index: 0, kind: input, shape index: {}]
  %s1 = inlined_call_operand.hbm [shape: bf16[128,128], index: 1, kind: input, shape index: {}]
  %s2 = inlined_call_operand.vmem [shape: f32[1,128], index: 2, kind: input, shape index: {}]
  %s3 = inlined_call_operand.hbm [shape: bf16[128,128], index: 3, kind: input, shape index: {}]
  %s4 = inlined_call_operand.vmem [shape: f32[1,128], index: 4, kind: input, shape index: {}]
  %s5 = inlined_call_operand.hbm [shape: bf16[128,128], index: 5, kind: input, shape index: {}]
  %s6 = inlined_call_operand.vmem [shape: f32[1,128], index: 6, kind: input, shape index: {}]
  %s7 = inlined_call_operand.hbm [shape: f32[2,128], index: 7, kind: output, shape index: {0}]
  %s8 = inlined_call_operand.hbm [shape: bf16[2,128], index: 8, kind: output, shape index: {1}]
  %9 = xla_tuple %s7, %s8
  %s10 = sld [smem:[#allocation0]]
  $region62: #{tpu_custom_call.1} parent=0
    _
  %s12 = ssub.s32 1, %s10
  %s13 = scalar_select 0, %s12, %s10
  $region1: #{tpu_custom_call.1} parent=0
    #allocation2 [shape = 'u8[4096]{0}', space=vmem, size = 0x1000, scoped, tag = 'input window, operand 0, single buffered']
    #allocation3 [shape = 's32[1]{0}', space=sflag, size = 0x4, scoped, tag = 'scoped memory for tpu_custom_call.1']
    #allocation4 [shape = 's32[1]{0}', space=sflag, size = 0x4, scoped, tag = 'scoped memory for tpu_custom_call.1']
    #allocation5 [shape = 'u8[32768]{0}', space=vmem, size = 0x8000, scoped, tag = 'input window, operand 1, single buffered']
    #allocation6 [shape = 's32[1]{0}', space=sflag, size = 0x4, scoped, tag = 'scoped memory for tpu_custom_call.1']
    #allocation7 [shape = 'u8[32768]{0}', space=vmem, size = 0x8000, scoped, tag = 'input window, operand 3, single buffered']
    #allocation8 [shape = 'u8[32768]{0}', space=vmem, size = 0x8000, scoped, tag = 'input window, operand 5, single buffered']
    #allocation9 [shape = 's32[1]{0}', space=sflag, size = 0x4, scoped, tag = 'scoped memory for tpu_custom_call.1']
    #allocation10 [shape = 'u8[8192]{0}', space=vmem, size = 0x2000, scoped, tag = 'output window, operand 0, single buffered']
    #allocation11 [shape = 'u8[4096]{0}', space=vmem, size = 0x1000, scoped, tag = 'output window, operand 1, single buffered']
    #allocation12 [shape = 's32[1]{0}', space=sflag, size = 0x4, scoped, tag = 'scoped memory for tpu_custom_call.1']
    %14 = vsyncpa [#allocation3], 0
    %15 = vsyncpa [#allocation6], 0
    %16 = vsyncpa [#allocation9], 0
    %17 = vsyncpa [#allocation4], 0
    %18 = vsyncpa [#allocation12], 0
    // Predicated region
    $region2: #{tpu_custom_call.1} parent=1 // pred_check
      _
    $region3: #{tpu_custom_call.1} parent=1 // pred_check_branch
      %20 = sbr.rel (0) target = $region5
    $region4: #{tpu_custom_call.1} parent=1 // pred_region
      %s22 = ssub.s32 128, 16
      %23 = vsyncadd [#allocation3], %s22
      %s24 = sshll.u32 [#allocation2], 4
      %s25 = int_to_ptr.vmem [resolvable:$true] %s24
      %30 = dma.hbm_to_vmem [thread:$0]  %s0, 16, %s25, [#allocation3], 16, 16, 1
    $region5: #{tpu_custom_call.1} parent=1 // pred_fallthru
      _
    // Predicated region
    $region6: #{tpu_custom_call.1} parent=1 // pred_check
      _
    $region7: #{tpu_custom_call.1} parent=1 // pred_check_branch
      %32 = sbr.rel (0) target = $region9
    $region8: #{tpu_custom_call.1} parent=1 // pred_region
      %s34 = ssub.s32 1024, 1024
      %35 = vsyncadd [#allocation6], %s34
      %s36 = sshll.u32 [#allocation5], 4
      %s37 = int_to_ptr.vmem [resolvable:$true] %s36
      %42 = dma.hbm_to_vmem [thread:$0]  %s1, 1024, %s37, [#allocation6], 64, 64, 4
    $region9: #{tpu_custom_call.1} parent=1 // pred_fallthru
      _
    // Predicated region
    $region10: #{tpu_custom_call.1} parent=1 // pred_check
      _
    $region11: #{tpu_custom_call.1} parent=1 // pred_check_branch
      %44 = sbr.rel (0) target = $region13
    $region12: #{tpu_custom_call.1} parent=1 // pred_region
      _
    $region13: #{tpu_custom_call.1} parent=1 // pred_fallthru
      _
    // Predicated region
    $region14: #{tpu_custom_call.1} parent=1 // pred_check
      _
    $region15: #{tpu_custom_call.1} parent=1 // pred_check_branch
      %46 = sbr.rel (0) target = $region17
    $region16: #{tpu_custom_call.1} parent=1 // pred_region
      %s48 = ssub.s32 1024, 1024
      %49 = vsyncadd [#allocation6], %s48
      %s50 = sshll.u32 [#allocation7], 4
      %s51 = int_to_ptr.vmem [resolvable:$true] %s50
      %56 = dma.hbm_to_vmem [thread:$0]  %s3, 1024, %s51, [#allocation6], 64, 64, 4
    $region17: #{tpu_custom_call.1} parent=1 // pred_fallthru
      _
    // Predicated region
    $region18: #{tpu_custom_call.1} parent=1 // pred_check
      _
    $region19: #{tpu_custom_call.1} parent=1 // pred_check_branch
      %58 = sbr.rel (0) target = $region21
    $region20: #{tpu_custom_call.1} parent=1 // pred_region
      _
    $region21: #{tpu_custom_call.1} parent=1 // pred_fallthru
      _
    // Predicated region
    $region22: #{tpu_custom_call.1} parent=1 // pred_check
      _
    $region23: #{tpu_custom_call.1} parent=1 // pred_check_branch
      %60 = sbr.rel (0) target = $region25
    $region24: #{tpu_custom_call.1} parent=1 // pred_region
      %s62 = ssub.s32 1024, 1024
      %63 = vsyncadd [#allocation9], %s62
      %s64 = sshll.u32 [#allocation8], 4
      %s65 = int_to_ptr.vmem [resolvable:$true] %s64
      %70 = dma.hbm_to_vmem [thread:$0]  %s5, 1024, %s65, [#allocation9], 64, 64, 4
    $region25: #{tpu_custom_call.1} parent=1 // pred_fallthru
      _
    // Predicated region
    $region26: #{tpu_custom_call.1} parent=1 // pred_check
      _
    $region27: #{tpu_custom_call.1} parent=1 // pred_check_branch
      %72 = sbr.rel (0) target = $region29
    $region28: #{tpu_custom_call.1} parent=1 // pred_region
      _
    $region29: #{tpu_custom_call.1} parent=1 // pred_fallthru
      _
    // Predicated region
    $region30: #{tpu_custom_call.1} parent=1 // pred_check
      _
    $region31: #{tpu_custom_call.1} parent=1 // pred_check_branch
      %74 = sbr.rel (0) target = $region33
    $region32: #{tpu_custom_call.1} parent=1 // pred_region
      %75 = dma.done [#allocation3], 128
    $region33: #{tpu_custom_call.1} parent=1 // pred_fallthru
      _
    // Predicated region
    $region34: #{tpu_custom_call.1} parent=1 // pred_check
      _
    $region35: #{tpu_custom_call.1} parent=1 // pred_check_branch
      %77 = sbr.rel (0) target = $region37
    $region36: #{tpu_custom_call.1} parent=1 // pred_region
      %78 = dma.done [#allocation6], 1024
    $region37: #{tpu_custom_call.1} parent=1 // pred_fallthru
      _
    // Predicated region
    $region38: #{tpu_custom_call.1} parent=1 // pred_check
      _
    $region39: #{tpu_custom_call.1} parent=1 // pred_check_branch
      %80 = sbr.rel (0) target = $region41
    $region40: #{tpu_custom_call.1} parent=1 // pred_region
      %81 = dma.done [#allocation6], 1024
    $region41: #{tpu_custom_call.1} parent=1 // pred_fallthru
      _
    // Predicated region
    $region42: #{tpu_custom_call.1} parent=1 // pred_check
      _
    $region43: #{tpu_custom_call.1} parent=1 // pred_check_branch
      %83 = sbr.rel (0) target = $region45
    $region44: #{tpu_custom_call.1} parent=1 // pred_region
      %84 = dma.done [#allocation9], 1024
    $region45: #{tpu_custom_call.1} parent=1 // pred_fallthru
      _
    %v86 = vld [vmem:[#allocation2] sm:$0x1]
    %v87 = vld [vmem:[#allocation2 + $0x1] sm:$0x1]
    %v88 = vld [vmem:[#allocation2 + $0x2] sm:$0x1]
    %v89 = vld [vmem:[#allocation2 + $0x3] sm:$0x1]
    %v90 = vld [vmem:[#allocation2 + $0x4] sm:$0x1]
    %v91 = vld [vmem:[#allocation2 + $0x5] sm:$0x1]
    %v92 = vld [vmem:[#allocation2 + $0x6] sm:$0x1]
    %v93 = vld [vmem:[#allocation2 + $0x7] sm:$0x1]
    %v94 = vld [vmem:[#allocation5] sm:$0xf]
    %v95 = vld [vmem:[#allocation5 + $0x4] sm:$0xf]
    %v96 = vld [vmem:[#allocation5 + $0x8] sm:$0xf]
    %v97 = vld [vmem:[#allocation5 + $0xc] sm:$0xf]
    %v98 = vld [vmem:[#allocation5 + $0x10] sm:$0xf]
    %v99 = vld [vmem:[#allocation5 + $0x14] sm:$0xf]
    %v100 = vld [vmem:[#allocation5 + $0x18] sm:$0xf]
    %v101 = vld [vmem:[#allocation5 + $0x1c] sm:$0xf]
    %v102 = vld [vmem:[#allocation5 + $0x20] sm:$0xf]
    %v103 = vld [vmem:[#allocation5 + $0x24] sm:$0xf]
    %v104 = vld [vmem:[#allocation5 + $0x28] sm:$0xf]
    %v105 = vld [vmem:[#allocation5 + $0x2c] sm:$0xf]
    %v106 = vld [vmem:[#allocation5 + $0x30] sm:$0xf]
    %v107 = vld [vmem:[#allocation5 + $0x34] sm:$0xf]
    %v108 = vld [vmem:[#allocation5 + $0x38] sm:$0xf]
    %v109 = vld [vmem:[#allocation5 + $0x3c] sm:$0xf]
    %v110 = vld [vmem:[%s2] sm:$0x1]
    %v112 = vlaneseq
    %v113 = vshrl.u32 %v112, 7
    %v114 = vsub.s32 0, %v113
    %v115 = vrot.slane %v110, %v114
    %v125 = vcombine.low %v86, %v87
    %v126 = vcombine.low %v88, %v89
    %v127 = vcombine.low %v90, %v91
    %v128 = vcombine.low %v92, %v93
    %v130 = vunpack.c.l.s4 1966171168
    %v131 = vunpack.c.0.s8 %v130
    %v132 = vlaneseq
    %v133 = vshrl.u32 %v132, 7
    %v134 = vsub.s32 %v131, %v133
    %v135 = vrot.slane %v125, %v134
    %v137 = vunpack.c.l.s4 1966171168
    %v138 = vunpack.c.0.s8 %v137
    %v139 = vlaneseq
    %v140 = vshrl.u32 %v139, 7
    %v141 = vsub.s32 %v138, %v140
    %v142 = vrot.slane %v126, %v141
    %v144 = vunpack.c.l.s4 1966171168
    %v145 = vunpack.c.0.s8 %v144
    %v146 = vlaneseq
    %v147 = vshrl.u32 %v146, 7
    %v148 = vsub.s32 %v145, %v147
    %v149 = vrot.slane %v127, %v148
    %v151 = vunpack.c.l.s4 1966171168
    %v152 = vunpack.c.0.s8 %v151
    %v153 = vlaneseq
    %v154 = vshrl.u32 %v153, 7
    %v155 = vsub.s32 %v152, %v154
    %v156 = vrot.slane %v128, %v155
    %v157 = vcombine.low %v135, %v142
    %v158 = vcombine.low %v149, %v156
    %v160 = vunpack.c.l.s4 1966171168
    %v161 = vunpack.c.0.s8 %v160
    %v162 = vlaneseq
    %v163 = vshrl.u32 %v162, 7
    %v164 = vsub.s32 %v161, %v163
    %v165 = vrot.slane %v157, %v164
    %v167 = vunpack.c.l.s4 1966171168
    %v168 = vunpack.c.0.s8 %v167
    %v169 = vlaneseq
    %v170 = vshrl.u32 %v169, 7
    %v171 = vsub.s32 %v168, %v170
    %v172 = vrot.slane %v158, %v171
    %v173 = vcombine.low %v165, %v172
    %v191 = vunpack.c.l.b16 %v94
    %v192 = vunpack.c.l.b16 %v95
    %v193 = vunpack.c.l.b16 %v96
    %v194 = vunpack.c.l.b16 %v97
    %v195 = vunpack.c.l.b16 %v98
    %v196 = vunpack.c.l.b16 %v99
    %v197 = vunpack.c.l.b16 %v100
    %v198 = vunpack.c.l.b16 %v101
    %v199 = vunpack.c.l.b16 %v102
    %v200 = vunpack.c.l.b16 %v103
    %v201 = vunpack.c.l.b16 %v104
    %v202 = vunpack.c.l.b16 %v105
    %v203 = vunpack.c.l.b16 %v106
    %v204 = vunpack.c.l.b16 %v107
    %v205 = vunpack.c.l.b16 %v108
    %v206 = vunpack.c.l.b16 %v109
    %v207 = vpack.c.b16 %v192, %v191
    %v208 = vpack.c.b16 %v194, %v193
    %v209 = vpack.c.b16 %v196, %v195
    %v210 = vpack.c.b16 %v198, %v197
    %v211 = vpack.c.b16 %v200, %v199
    %v212 = vpack.c.b16 %v202, %v201
    %v213 = vpack.c.b16 %v204, %v203
    %v214 = vpack.c.b16 %v206, %v205
    %223 = vmatprep.subr.bf16.mxu0 0
    %224 = vmatpush1.bf16.msra.mxu0 %v214
    %225 = vmatprep.subr.bf16.mxu0 0
    %226 = vmatpush1.bf16.msra.mxu0 %v213
    %227 = vmatprep.subr.bf16.mxu0 0
    %228 = vmatpush1.bf16.msra.mxu0 %v212
    %229 = vmatprep.subr.bf16.mxu0 0
    %230 = vmatpush1.bf16.msra.mxu0 %v211
    %231 = vmatprep.subr.bf16.mxu0 0
    %232 = vmatpush1.bf16.msra.mxu0 %v210
    %233 = vmatprep.subr.bf16.mxu0 0
    %234 = vmatpush1.bf16.msra.mxu0 %v209
    %235 = vmatprep.subr.bf16.mxu0 0
    %236 = vmatpush1.bf16.msra.mxu0 %v208
    %237 = vmatprep.subr.bf16.mxu0 0
    %238 = vmatpush1.bf16.msra.mxu0 %v207
    %239 = vmatprep.subr.bf16.mxu0 0
    %240 = vmatpush2.bf16.msra.mxu0 0
    %241 = vmatprep.subr.bf16.mxu0 0
    %242 = vmatpush2.bf16.msra.mxu0 0
    %243 = vmatprep.subr.bf16.mxu0 0
    %244 = vmatpush2.bf16.msra.mxu0 0
    %245 = vmatprep.subr.bf16.mxu0 0
    %246 = vmatpush2.bf16.msra.mxu0 0
    %247 = vmatprep.subr.bf16.mxu0 0
    %248 = vmatpush2.bf16.msra.mxu0 0
    %249 = vmatprep.subr.bf16.mxu0 0
    %250 = vmatpush2.bf16.msra.mxu0 0
    %251 = vmatprep.subr.bf16.mxu0 0
    %252 = vmatpush2.bf16.msra.mxu0 0
    %253 = vmatprep.subr.bf16.mxu0 0
    %254 = vmatpush2.bf16.msra.mxu0 0
    %255 = vmatprep.mubr.bf16.mxu0 0
    %256 = vmatmul.mubr.bf16.gmra.mxu0 %v173
    %v257 = vpop.f32.mrf.mxu0
    %v258 = vadd.f32 %v115, %v257
    %v259 = vpop.f32.mrf.mxu0
    %v260 = vpop.f32.mrf.mxu0
    %v261 = vadd.f32 %v115, %v260
    %v262 = vpop.f32.mrf.mxu0
    %263 = vdwg.mxu0
    %v264 = vmax.f32 %v258, 0.0
    %v265 = vmax.f32 %v261, 0.0
    %v266 = vpack.c.bf16 %v265, %v264
    %v267 = vld [vmem:[#allocation7] sm:$0xf]
    %v268 = vld [vmem:[#allocation7 + $0x4] sm:$0xf]
    %v269 = vld [vmem:[#allocation7 + $0x8] sm:$0xf]
    %v270 = vld [vmem:[#allocation7 + $0xc] sm:$0xf]
    %v271 = vld [vmem:[#allocation7 + $0x10] sm:$0xf]
    %v272 = vld [vmem:[#allocation7 + $0x14] sm:$0xf]
    %v273 = vld [vmem:[#allocation7 + $0x18] sm:$0xf]
    %v274 = vld [vmem:[#allocation7 + $0x1c] sm:$0xf]
    %v275 = vld [vmem:[#allocation7 + $0x20] sm:$0xf]
    %v276 = vld [vmem:[#allocation7 + $0x24] sm:$0xf]
    %v277 = vld [vmem:[#allocation7 + $0x28] sm:$0xf]
    %v278 = vld [vmem:[#allocation7 + $0x2c] sm:$0xf]
    %v279 = vld [vmem:[#allocation7 + $0x30] sm:$0xf]
    %v280 = vld [vmem:[#allocation7 + $0x34] sm:$0xf]
    %v281 = vld [vmem:[#allocation7 + $0x38] sm:$0xf]
    %v282 = vld [vmem:[#allocation7 + $0x3c] sm:$0xf]
    %v283 = vld [vmem:[%s4] sm:$0x1]
    %v285 = vlaneseq
    %v286 = vshrl.u32 %v285, 7
    %v287 = vsub.s32 0, %v286
    %v288 = vrot.slane %v283, %v287
    %v306 = vunpack.c.l.b16 %v267
    %v307 = vunpack.c.l.b16 %v268
    %v308 = vunpack.c.l.b16 %v269
    %v309 = vunpack.c.l.b16 %v270
    %v310 = vunpack.c.l.b16 %v271
    %v311 = vunpack.c.l.b16 %v272
    %v312 = vunpack.c.l.b16 %v273
    %v313 = vunpack.c.l.b16 %v274
    %v314 = vunpack.c.l.b16 %v275
    %v315 = vunpack.c.l.b16 %v276
    %v316 = vunpack.c.l.b16 %v277
    %v317 = vunpack.c.l.b16 %v278
    %v318 = vunpack.c.l.b16 %v279
    %v319 = vunpack.c.l.b16 %v280
    %v320 = vunpack.c.l.b16 %v281
    %v321 = vunpack.c.l.b16 %v282
    %v322 = vpack.c.b16 %v307, %v306
    %v323 = vpack.c.b16 %v309, %v308
    %v324 = vpack.c.b16 %v311, %v310
    %v325 = vpack.c.b16 %v313, %v312
    %v326 = vpack.c.b16 %v315, %v314
    %v327 = vpack.c.b16 %v317, %v316
    %v328 = vpack.c.b16 %v319, %v318
    %v329 = vpack.c.b16 %v321, %v320
    %338 = vmatprep.subr.bf16.mxu0 0
    %339 = vmatpush1.bf16.msra.mxu0 %v329
    %340 = vmatprep.subr.bf16.mxu0 0
    %341 = vmatpush1.bf16.msra.mxu0 %v328
    %342 = vmatprep.subr.bf16.mxu0 0
    %343 = vmatpush1.bf16.msra.mxu0 %v327
    %344 = vmatprep.subr.bf16.mxu0 0
    %345 = vmatpush1.bf16.msra.mxu0 %v326
    %346 = vmatprep.subr.bf16.mxu0 0
    %347 = vmatpush1.bf16.msra.mxu0 %v325
    %348 = vmatprep.subr.bf16.mxu0 0
    %349 = vmatpush1.bf16.msra.mxu0 %v324
    %350 = vmatprep.subr.bf16.mxu0 0
    %351 = vmatpush1.bf16.msra.mxu0 %v323
    %352 = vmatprep.subr.bf16.mxu0 0
    %353 = vmatpush1.bf16.msra.mxu0 %v322
    %354 = vmatprep.subr.bf16.mxu0 0
    %355 = vmatpush2.bf16.msra.mxu0 0
    %356 = vmatprep.subr.bf16.mxu0 0
    %357 = vmatpush2.bf16.msra.mxu0 0
    %358 = vmatprep.subr.bf16.mxu0 0
    %359 = vmatpush2.bf16.msra.mxu0 0
    %360 = vmatprep.subr.bf16.mxu0 0
    %361 = vmatpush2.bf16.msra.mxu0 0
    %362 = vmatprep.subr.bf16.mxu0 0
    %363 = vmatpush2.bf16.msra.mxu0 0
    %364 = vmatprep.subr.bf16.mxu0 0
    %365 = vmatpush2.bf16.msra.mxu0 0
    %366 = vmatprep.subr.bf16.mxu0 0
    %367 = vmatpush2.bf16.msra.mxu0 0
    %368 = vmatprep.subr.bf16.mxu0 0
    %369 = vmatpush2.bf16.msra.mxu0 0
    %370 = vmatprep.mubr.bf16.mxu0 0
    %371 = vmatmul.mubr.bf16.gmra.mxu0 %v266
    %v372 = vpop.f32.mrf.mxu0
    %v373 = vadd.f32 %v288, %v372
    %v374 = vpop.f32.mrf.mxu0
    %v375 = vpop.f32.mrf.mxu0
    %v376 = vadd.f32 %v288, %v375
    %v377 = vpop.f32.mrf.mxu0
    %378 = vdwg.mxu0
    %v379 = vmax.f32 %v373, 0.0
    %v380 = vmax.f32 %v376, 0.0
    %v381 = vpack.c.bf16 %v380, %v379
    %v382 = vld [vmem:[#allocation8] sm:$0xf]
    %v383 = vld [vmem:[#allocation8 + $0x4] sm:$0xf]
    %v384 = vld [vmem:[#allocation8 + $0x8] sm:$0xf]
    %v385 = vld [vmem:[#allocation8 + $0xc] sm:$0xf]
    %v386 = vld [vmem:[#allocation8 + $0x10] sm:$0xf]
    %v387 = vld [vmem:[#allocation8 + $0x14] sm:$0xf]
    %v388 = vld [vmem:[#allocation8 + $0x18] sm:$0xf]
    %v389 = vld [vmem:[#allocation8 + $0x1c] sm:$0xf]
    %v390 = vld [vmem:[#allocation8 + $0x20] sm:$0xf]
    %v391 = vld [vmem:[#allocation8 + $0x24] sm:$0xf]
    %v392 = vld [vmem:[#allocation8 + $0x28] sm:$0xf]
    %v393 = vld [vmem:[#allocation8 + $0x2c] sm:$0xf]
    %v394 = vld [vmem:[#allocation8 + $0x30] sm:$0xf]
    %v395 = vld [vmem:[#allocation8 + $0x34] sm:$0xf]
    %v396 = vld [vmem:[#allocation8 + $0x38] sm:$0xf]
    %v397 = vld [vmem:[#allocation8 + $0x3c] sm:$0xf]
    %v398 = vld [vmem:[%s6] sm:$0x1]
    %v400 = vlaneseq
    %v401 = vshrl.u32 %v400, 7
    %v402 = vsub.s32 0, %v401
    %v403 = vrot.slane %v398, %v402
    %v421 = vunpack.c.l.b16 %v382
    %v422 = vunpack.c.l.b16 %v383
    %v423 = vunpack.c.l.b16 %v384
    %v424 = vunpack.c.l.b16 %v385
    %v425 = vunpack.c.l.b16 %v386
    %v426 = vunpack.c.l.b16 %v387
    %v427 = vunpack.c.l.b16 %v388
    %v428 = vunpack.c.l.b16 %v389
    %v429 = vunpack.c.l.b16 %v390
    %v430 = vunpack.c.l.b16 %v391
    %v431 = vunpack.c.l.b16 %v392
    %v432 = vunpack.c.l.b16 %v393
    %v433 = vunpack.c.l.b16 %v394
    %v434 = vunpack.c.l.b16 %v395
    %v435 = vunpack.c.l.b16 %v396
    %v436 = vunpack.c.l.b16 %v397
    %v437 = vpack.c.b16 %v422, %v421
    %v438 = vpack.c.b16 %v424, %v423
    %v439 = vpack.c.b16 %v426, %v425
    %v440 = vpack.c.b16 %v428, %v427
    %v441 = vpack.c.b16 %v430, %v429
    %v442 = vpack.c.b16 %v432, %v431
    %v443 = vpack.c.b16 %v434, %v433
    %v444 = vpack.c.b16 %v436, %v435
    %453 = vmatprep.subr.bf16.mxu0 0
    %454 = vmatpush1.bf16.msra.mxu0 %v444
    %455 = vmatprep.subr.bf16.mxu0 0
    %456 = vmatpush1.bf16.msra.mxu0 %v443
    %457 = vmatprep.subr.bf16.mxu0 0
    %458 = vmatpush1.bf16.msra.mxu0 %v442
    %459 = vmatprep.subr.bf16.mxu0 0
    %460 = vmatpush1.bf16.msra.mxu0 %v441
    %461 = vmatprep.subr.bf16.mxu0 0
    %462 = vmatpush1.bf16.msra.mxu0 %v440
    %463 = vmatprep.subr.bf16.mxu0 0
    %464 = vmatpush1.bf16.msra.mxu0 %v439
    %465 = vmatprep.subr.bf16.mxu0 0
    %466 = vmatpush1.bf16.msra.mxu0 %v438
    %467 = vmatprep.subr.bf16.mxu0 0
    %468 = vmatpush1.bf16.msra.mxu0 %v437
    %469 = vmatprep.subr.bf16.mxu0 0
    %470 = vmatpush2.bf16.msra.mxu0 0
    %471 = vmatprep.subr.bf16.mxu0 0
    %472 = vmatpush2.bf16.msra.mxu0 0
    %473 = vmatprep.subr.bf16.mxu0 0
    %474 = vmatpush2.bf16.msra.mxu0 0
    %475 = vmatprep.subr.bf16.mxu0 0
    %476 = vmatpush2.bf16.msra.mxu0 0
    %477 = vmatprep.subr.bf16.mxu0 0
    %478 = vmatpush2.bf16.msra.mxu0 0
    %479 = vmatprep.subr.bf16.mxu0 0
    %480 = vmatpush2.bf16.msra.mxu0 0
    %481 = vmatprep.subr.bf16.mxu0 0
    %482 = vmatpush2.bf16.msra.mxu0 0
    %483 = vmatprep.subr.bf16.mxu0 0
    %484 = vmatpush2.bf16.msra.mxu0 0
    %485 = vmatprep.mubr.bf16.mxu0 0
    %486 = vmatmul.mubr.bf16.gmra.mxu0 %v381
    %v487 = vpop.f32.mrf.mxu0
    %v488 = vadd.f32 %v403, %v487
    %v489 = vpop.f32.mrf.mxu0
    %v490 = vpop.f32.mrf.mxu0
    %v491 = vadd.f32 %v403, %v490
    %v492 = vpop.f32.mrf.mxu0
    %493 = vdwg.mxu0
    %494 = vst [vmem:[#allocation10] sm:$0xff] %v488
    %495 = vst [vmem:[#allocation10 + $0x8] sm:$0xff] %v491
    %v496 = vlaneseq
    %v497 = vand.u32 %v496, 127
    %vm498 = vcmp.lt.s32.totalorder %v497, 8
    %v499 = vsel %vm498, %v488, -inf
    %v500 = vsel %vm498, %v491, -inf
    %501 = vmax.xlane.f32.xlu0 %v499
    %v502 = vpop.xlane.xlu0 %501
    %503 = vmax.xlane.f32.xlu0 %v500
    %v504 = vpop.xlane.xlu0 %503
    %v505 = vsub.f32 %v499, %v502
    %v506 = vsub.f32 %v500, %v504
    %v507 = vmul.f32 %v505, 1.442695
    %v508 = vpow.pop %v507
    %v509 = vmul.f32 %v506, 1.442695
    %v510 = vpow.pop %v509
    %v511 = vsel %vm498, %v508, 0.0
    %v512 = vsel %vm498, %v510, 0.0
    %513 = vadd.xlane.f32.xlu0 %v511
    %v514 = vpop.xlane.xlu0 %513
    %515 = vadd.xlane.f32.xlu0 %v512
    %v516 = vpop.xlane.xlu0 %515
    %v517 = vrcp.pop %v514
    %v518 = vrcp.pop %v516
    %v519 = vmul.f32 %v511, %v517
    %v520 = vmul.f32 %v512, %v518
    %v521 = vpack.c.bf16 %v520, %v519
    %v523 = vcombine.high %v521, %v521
    %v525 = vunpack.c.l.s4 1966171168
    %v526 = vunpack.c.0.s8 %v525
    %v527 = vlaneseq
    %v528 = vshrl.u32 %v527, 7
    %v529 = vsub.s32 %v526, %v528
    %v530 = vrot.slane %v521, %v529
    %v532 = vunpack.c.l.s4 1966171168
    %v533 = vunpack.c.0.s8 %v532
    %v534 = vlaneseq
    %v535 = vshrl.u32 %v534, 7
    %v536 = vsub.s32 %v533, %v535
    %v537 = vrot.slane %v523, %v536
    %v538 = vcombine.high %v530, %v530
    %v539 = vcombine.high %v537, %v537
    %v541 = vunpack.c.l.s4 1966171168
    %v542 = vunpack.c.0.s8 %v541
    %v543 = vlaneseq
    %v544 = vshrl.u32 %v543, 7
    %v545 = vsub.s32 %v542, %v544
    %v546 = vrot.slane %v530, %v545
    %v548 = vunpack.c.l.s4 1966171168
    %v549 = vunpack.c.0.s8 %v548
    %v550 = vlaneseq
    %v551 = vshrl.u32 %v550, 7
    %v552 = vsub.s32 %v549, %v551
    %v553 = vrot.slane %v537, %v552
    %v555 = vunpack.c.l.s4 1966171168
    %v556 = vunpack.c.0.s8 %v555
    %v557 = vlaneseq
    %v558 = vshrl.u32 %v557, 7
    %v559 = vsub.s32 %v556, %v558
    %v560 = vrot.slane %v538, %v559
    %v562 = vunpack.c.l.s4 1966171168
    %v563 = vunpack.c.0.s8 %v562
    %v564 = vlaneseq
    %v565 = vshrl.u32 %v564, 7
    %v566 = vsub.s32 %v563, %v565
    %v567 = vrot.slane %v539, %v566
    %v568 = vcombine.high %v546, %v546
    %v569 = vcombine.high %v553, %v553
    %v570 = vcombine.high %v560, %v560
    %v571 = vcombine.high %v567, %v567
    %580 = vst [vmem:[#allocation11] sm:$0x1] %v546
    %581 = vst [vmem:[#allocation11 + $0x1] sm:$0x1] %v560
    %582 = vst [vmem:[#allocation11 + $0x2] sm:$0x1] %v568
    %583 = vst [vmem:[#allocation11 + $0x3] sm:$0x1] %v570
    %584 = vst [vmem:[#allocation11 + $0x4] sm:$0x1] %v553
    %585 = vst [vmem:[#allocation11 + $0x5] sm:$0x1] %v567
    %586 = vst [vmem:[#allocation11 + $0x6] sm:$0x1] %v569
    %587 = vst [vmem:[#allocation11 + $0x7] sm:$0x1] %v571
    // Predicated region
    $region46: #{tpu_custom_call.1} parent=1 // pred_check
      _
    $region47: #{tpu_custom_call.1} parent=1 // pred_check_branch
      %589 = sbr.rel (0) target = $region49
    $region48: #{tpu_custom_call.1} parent=1 // pred_region
      %s591 = ssub.s32 256, 32
      %592 = vsyncadd [#allocation4], %s591
      %s593 = sshll.u32 [#allocation10], 4
      %s594 = int_to_ptr.vmem [resolvable:$true] %s593
      %599 = dma.vmem_to_hbm [thread:$0]  %s594, 32, %s7, [#allocation4], 32, 32, 2
    $region49: #{tpu_custom_call.1} parent=1 // pred_fallthru
      _
    // Predicated region
    $region50: #{tpu_custom_call.1} parent=1 // pred_check
      _
    $region51: #{tpu_custom_call.1} parent=1 // pred_check_branch
      %601 = sbr.rel (0) target = $region53
    $region52: #{tpu_custom_call.1} parent=1 // pred_region
      %s603 = ssub.s32 128, 16
      %604 = vsyncadd [#allocation12], %s603
      %s605 = sshll.u32 [#allocation11], 4
      %s606 = int_to_ptr.vmem [resolvable:$true] %s605
      %611 = dma.vmem_to_hbm [thread:$0]  %s606, 16, %s8, [#allocation12], 16, 16, 1
    $region53: #{tpu_custom_call.1} parent=1 // pred_fallthru
      _
    // Predicated region
    $region54: #{tpu_custom_call.1} parent=1 // pred_check
      _
    $region55: #{tpu_custom_call.1} parent=1 // pred_check_branch
      %613 = sbr.rel (0) target = $region57
    $region56: #{tpu_custom_call.1} parent=1 // pred_region
      %614 = dma.done [#allocation4], 256
    $region57: #{tpu_custom_call.1} parent=1 // pred_fallthru
      _
    // Predicated region
    $region58: #{tpu_custom_call.1} parent=1 // pred_check
      _
    $region59: #{tpu_custom_call.1} parent=1 // pred_check_branch
      %616 = sbr.rel (0) target = $region61
    $region60: #{tpu_custom_call.1} parent=1 // pred_region
      %617 = dma.done [#allocation12], 128
    $region61: #{tpu_custom_call.1} parent=1 // pred_fallthru
      _
    %618 = vsyncpa [#allocation3], 1
    %619 = vsyncpa [#allocation6], 1
    %620 = vsyncpa [#allocation9], 1
    %621 = vsyncpa [#allocation4], 1
    %622 = vsyncpa [#allocation12], 1

</llo_original>
